<compile_context>
chip_gen: v5e
topology: v5e:2x2
jax: 0.10.0
libtpu: 0.0.40
codegen_flags: <defaults>
</compile_context>

<pallas_src>
import functools

import jax
import jax.numpy as jnp
from jax.experimental import pallas as pl
from jax.experimental.pallas import tpu as pltpu

_MAX_TL = 2048  # output lanes per grid step


def _round_up(a, b):
    return pl.cdiv(a, b) * b


def _make_conv_kernel(shifts, tl, sh, cout, num_l):
    """Tap-sum convolution kernel.

    x_ref: (1, Cin, L_in)       padded, flattened image (VMEM-resident per b)
    w_ref: (kh*kw, Cout, Cin)   per-tap weight matrices
    b_ref: (Cout, 1)            bias (broadcast along lanes)
    o_ref: (1, Cout, tl)        output tile (flat padded-coordinate pixels)
    """
    win = tl + sh

    def kernel(x_ref, w_ref, b_ref, o_ref):
        if num_l == 1:
            chunk = x_ref[0]                                  # (Cin, L_in)
        else:
            l0 = pl.multiple_of(pl.program_id(1) * tl, tl)    # 128-aligned
            chunk = x_ref[0, :, pl.ds(l0, win)]               # (Cin, tl + sh)
        acc = jnp.zeros((cout, tl), jnp.float32)
        for t, s in enumerate(shifts):                        # static unroll
            xs = chunk[:, s:s + tl]                           # (Cin, tl)
            acc = acc + jnp.dot(w_ref[t], xs,
                                preferred_element_type=jnp.float32)
        o_ref[0] = (acc + b_ref[...]).astype(o_ref.dtype)

    return kernel


@functools.partial(jax.jit, static_argnames=("stride", "padding"))
def alter_conv2d(x, weight, bias, *, stride=1, padding=0):
    """Pallas-backed equivalent of AlterConv2D.forward(x, bias).

    x:      (B, Cin, H, W)   NCHW, like PyTorch
    weight: (Cout, Cin, kh, kw)
    bias:   (Cout,)
    returns (B, Cout, Ho, Wo) NCHW
    """
    B, Cin, H, W = x.shape
    Cout, _, kh, kw = weight.shape
    Hp, Wp = H + 2 * padding, W + 2 * padding
    Ho = (Hp - kh) // stride + 1
    Wo = (Wp - kw) // stride + 1
    L = Hp * Wp

    # Lane tiling of the flat pixel axis.
    TL = min(_MAX_TL, _round_up(L, 128))
    L_out_pad = _round_up(L, TL)
    num_l = L_out_pad // TL
    max_shift = (kh - 1) * Wp + (kw - 1)
    SH = _round_up(max_shift, 128) if max_shift > 0 else 0

    # Single-pass padding: spatial zero pad (F.conv2d semantics) plus enough
    # extra zero rows at the bottom that every shifted in-kernel window
    # (TL + SH lanes from any tile origin) stays in bounds. One jnp.pad,
    # then a free reshape to the flat NCHW layout.
    rows_needed = pl.cdiv(L_out_pad + SH, Wp)
    Hp_ext = max(Hp, rows_needed)
    L_in = Hp_ext * Wp
    xp = jnp.pad(x, ((0, 0), (0, 0),
                     (padding, padding + (Hp_ext - Hp)),
                     (padding, padding)))
    xf = xp.reshape(B, Cin, L_in)

    # Per-tap (Cout, Cin) weight matrices, tap order = row-major (i, j).
    w_taps = weight.transpose(2, 3, 0, 1).reshape(kh * kw, Cout, Cin)
    b2d = bias.reshape(Cout, 1)

    shifts = tuple(i * Wp + j for i in range(kh) for j in range(kw))
    kernel = _make_conv_kernel(shifts, TL, SH, Cout, num_l)

    out_full = pl.pallas_call(
        kernel,
        out_shape=jax.ShapeDtypeStruct((B, Cout, L_out_pad), x.dtype),
        grid_spec=pltpu.PrefetchScalarGridSpec(
            num_scalar_prefetch=0,
            grid=(B, num_l),
            in_specs=[
                # Whole padded image stays VMEM-resident across the l axis
                # (index map constant in l -> no re-DMA per tile).
                pl.BlockSpec((1, Cin, L_in), lambda b, l: (b, 0, 0)),
                pl.BlockSpec((kh * kw, Cout, Cin), lambda b, l: (0, 0, 0)),
                pl.BlockSpec((Cout, 1), lambda b, l: (0, 0)),
            ],
            out_specs=pl.BlockSpec((1, Cout, TL), lambda b, l: (b, 0, l)),
        ),
        compiler_params=pltpu.CompilerParams(
            dimension_semantics=("parallel", "parallel")),
    )(xf, w_taps, b2d)

    # The kernel computes the stride-1 conv at every padded coordinate; slice
    # the valid region and subsample for stride > 1 (correct; extra compute
    # only when stride > 1).
    # TODO(synk): for stride > 1 a dedicated output index map would avoid the
    # ~stride^2 over-compute; not needed for the stride=1 config exercised here.
    out = out_full[:, :, :L].reshape(B, Cout, Hp, Wp)
    out = out[:, :, :(Ho - 1) * stride + 1:stride,
                    :(Wo - 1) * stride + 1:stride]
    return out


if __name__ == "__main__":
    # Module config: in_channels=4, out_channels=8, kernel_size=3,
    # stride=1, padding=1 ("same"-style conv).
    B, Cin, H, W = 2, 4, 16, 16
    Cout, ksize = 8, 3
    stride, padding = 1, 1

    key = jax.random.PRNGKey(0)
    kx, kw_, kb = jax.random.split(key, 3)
    x = jax.random.normal(kx, (B, Cin, H, W), dtype=jnp.float32)
    # nn.Conv2d weight shape: (Cout, Cin, kh, kw).
    weight = jax.random.normal(kw_, (Cout, Cin, ksize, ksize),
                               dtype=jnp.float32) * 0.1
    # Bias is a forward-pass input to AlterConv2D, not an owned parameter.
    bias = jax.random.normal(kb, (Cout,), dtype=jnp.float32)

    out = alter_conv2d(x, weight, bias, stride=stride, padding=padding)
    out = jax.block_until_ready(out)

    # Cross-check against XLA's conv (reference semantics = F.conv2d).
    ref = jax.lax.conv_general_dilated(
        x, weight, window_strides=(stride, stride),
        padding=((padding, padding), (padding, padding)),
        dimension_numbers=("NCHW", "OIHW", "NCHW"))
    ref = ref + bias.reshape(1, Cout, 1, 1)
    assert out.shape == (B, Cout, H, W)
    assert jnp.allclose(out, ref, atol=1e-4, rtol=1e-4)

    print("KERNEL_OK")
</pallas_src>

<mosaic_0001>
module attributes {stable_mosaic.version = 11 : i64} {
  func.func @kernel(%arg0: i32, %arg1: i32, %arg2: memref<1x4x522xf32, #tpu.memory_space<vmem>>, %arg3: memref<9x8x4xf32, #tpu.memory_space<vmem>>, %arg4: memref<8x1xf32, #tpu.memory_space<vmem>>, %arg5: memref<1x8x384xf32, #tpu.memory_space<vmem>>) attributes {dimension_semantics = [#tpu.dimension_semantics<parallel>, #tpu.dimension_semantics<parallel>], iteration_bounds = array<i64: 2, 1>, scalar_prefetch = 0 : i64, scratch_operands = 0 : i64, tpu.core_type = #tpu.core_type<tc>, window_params = [{transform_indices = @transform_0, window_bounds = array<i64: 1, 4, 522>}, {pipeline_mode = #tpu.pipeline_mode<synchronous>, transform_indices = @transform_1, window_bounds = array<i64: 9, 8, 4>}, {pipeline_mode = #tpu.pipeline_mode<synchronous>, transform_indices = @transform_2, window_bounds = array<i64: 8, 1>}, {transform_indices = @transform_3, window_bounds = array<i64: 1, 8, 384>}]} {
    %c0 = arith.constant 0 : index
    %c0_0 = arith.constant 0 : index
    %c0_1 = arith.constant 0 : index
    %0 = vector.load %arg2[%c0, %c0_0, %c0_1] : memref<1x4x522xf32, #tpu.memory_space<vmem>>, vector<1x4x522xf32>
    %1 = vector.shape_cast %0 : vector<1x4x522xf32> to vector<4x522xf32>
    %cst = arith.constant 0.000000e+00 : f32
    %2 = vector.broadcast %cst : f32 to vector<8x384xf32>
    %3 = vector.extract_strided_slice %1 {offsets = [0, 0], sizes = [4, 384], strides = [1, 1]} : vector<4x522xf32> to vector<4x384xf32>
    %c0_2 = arith.constant 0 : index
    %c0_3 = arith.constant 0 : index
    %c0_4 = arith.constant 0 : index
    %4 = vector.load %arg3[%c0_2, %c0_3, %c0_4] : memref<9x8x4xf32, #tpu.memory_space<vmem>>, vector<1x8x4xf32>
    %5 = vector.shape_cast %4 : vector<1x8x4xf32> to vector<8x4xf32>
    %cst_5 = arith.constant dense<0.000000e+00> : vector<8x384xf32>
    %6 = tpu.matmul %5, %3, %cst_5 {dimension_numbers = #tpu.dot_dimension_numbers<[1], [0], [0], [1], [0, 0, 1, 1], [], []>} : vector<8x4xf32>, vector<4x384xf32>, vector<8x384xf32> -> vector<8x384xf32>
    %7 = arith.addf %2, %6 : vector<8x384xf32>
    %8 = vector.extract_strided_slice %1 {offsets = [0, 1], sizes = [4, 384], strides = [1, 1]} : vector<4x522xf32> to vector<4x384xf32>
    %c1 = arith.constant 1 : index
    %c0_6 = arith.constant 0 : index
    %c0_7 = arith.constant 0 : index
    %9 = vector.load %arg3[%c1, %c0_6, %c0_7] : memref<9x8x4xf32, #tpu.memory_space<vmem>>, vector<1x8x4xf32>
    %10 = vector.shape_cast %9 : vector<1x8x4xf32> to vector<8x4xf32>
    %cst_8 = arith.constant dense<0.000000e+00> : vector<8x384xf32>
    %11 = tpu.matmul %10, %8, %cst_8 {dimension_numbers = #tpu.dot_dimension_numbers<[1], [0], [0], [1], [0, 0, 1, 1], [], []>} : vector<8x4xf32>, vector<4x384xf32>, vector<8x384xf32> -> vector<8x384xf32>
    %12 = arith.addf %7, %11 : vector<8x384xf32>
    %13 = vector.extract_strided_slice %1 {offsets = [0, 2], sizes = [4, 384], strides = [1, 1]} : vector<4x522xf32> to vector<4x384xf32>
    %c2 = arith.constant 2 : index
    %c0_9 = arith.constant 0 : index
    %c0_10 = arith.constant 0 : index
    %14 = vector.load %arg3[%c2, %c0_9, %c0_10] : memref<9x8x4xf32, #tpu.memory_space<vmem>>, vector<1x8x4xf32>
    %15 = vector.shape_cast %14 : vector<1x8x4xf32> to vector<8x4xf32>
    %cst_11 = arith.constant dense<0.000000e+00> : vector<8x384xf32>
    %16 = tpu.matmul %15, %13, %cst_11 {dimension_numbers = #tpu.dot_dimension_numbers<[1], [0], [0], [1], [0, 0, 1, 1], [], []>} : vector<8x4xf32>, vector<4x384xf32>, vector<8x384xf32> -> vector<8x384xf32>
    %17 = arith.addf %12, %16 : vector<8x384xf32>
    %18 = vector.extract_strided_slice %1 {offsets = [0, 18], sizes = [4, 384], strides = [1, 1]} : vector<4x522xf32> to vector<4x384xf32>
    %c3 = arith.constant 3 : index
    %c0_12 = arith.constant 0 : index
    %c0_13 = arith.constant 0 : index
    %19 = vector.load %arg3[%c3, %c0_12, %c0_13] : memref<9x8x4xf32, #tpu.memory_space<vmem>>, vector<1x8x4xf32>
    %20 = vector.shape_cast %19 : vector<1x8x4xf32> to vector<8x4xf32>
    %cst_14 = arith.constant dense<0.000000e+00> : vector<8x384xf32>
    %21 = tpu.matmul %20, %18, %cst_14 {dimension_numbers = #tpu.dot_dimension_numbers<[1], [0], [0], [1], [0, 0, 1, 1], [], []>} : vector<8x4xf32>, vector<4x384xf32>, vector<8x384xf32> -> vector<8x384xf32>
    %22 = arith.addf %17, %21 : vector<8x384xf32>
    %23 = vector.extract_strided_slice %1 {offsets = [0, 19], sizes = [4, 384], strides = [1, 1]} : vector<4x522xf32> to vector<4x384xf32>
    %c4 = arith.constant 4 : index
    %c0_15 = arith.constant 0 : index
    %c0_16 = arith.constant 0 : index
    %24 = vector.load %arg3[%c4, %c0_15, %c0_16] : memref<9x8x4xf32, #tpu.memory_space<vmem>>, vector<1x8x4xf32>
    %25 = vector.shape_cast %24 : vector<1x8x4xf32> to vector<8x4xf32>
    %cst_17 = arith.constant dense<0.000000e+00> : vector<8x384xf32>
    %26 = tpu.matmul %25, %23, %cst_17 {dimension_numbers = #tpu.dot_dimension_numbers<[1], [0], [0], [1], [0, 0, 1, 1], [], []>} : vector<8x4xf32>, vector<4x384xf32>, vector<8x384xf32> -> vector<8x384xf32>
    %27 = arith.addf %22, %26 : vector<8x384xf32>
    %28 = vector.extract_strided_slice %1 {offsets = [0, 20], sizes = [4, 384], strides = [1, 1]} : vector<4x522xf32> to vector<4x384xf32>
    %c5 = arith.constant 5 : index
    %c0_18 = arith.constant 0 : index
    %c0_19 = arith.constant 0 : index
    %29 = vector.load %arg3[%c5, %c0_18, %c0_19] : memref<9x8x4xf32, #tpu.memory_space<vmem>>, vector<1x8x4xf32>
    %30 = vector.shape_cast %29 : vector<1x8x4xf32> to vector<8x4xf32>
    %cst_20 = arith.constant dense<0.000000e+00> : vector<8x384xf32>
    %31 = tpu.matmul %30, %28, %cst_20 {dimension_numbers = #tpu.dot_dimension_numbers<[1], [0], [0], [1], [0, 0, 1, 1], [], []>} : vector<8x4xf32>, vector<4x384xf32>, vector<8x384xf32> -> vector<8x384xf32>
    %32 = arith.addf %27, %31 : vector<8x384xf32>
    %33 = vector.extract_strided_slice %1 {offsets = [0, 36], sizes = [4, 384], strides = [1, 1]} : vector<4x522xf32> to vector<4x384xf32>
    %c6 = arith.constant 6 : index
    %c0_21 = arith.constant 0 : index
    %c0_22 = arith.constant 0 : index
    %34 = vector.load %arg3[%c6, %c0_21, %c0_22] : memref<9x8x4xf32, #tpu.memory_space<vmem>>, vector<1x8x4xf32>
    %35 = vector.shape_cast %34 : vector<1x8x4xf32> to vector<8x4xf32>
    %cst_23 = arith.constant dense<0.000000e+00> : vector<8x384xf32>
    %36 = tpu.matmul %35, %33, %cst_23 {dimension_numbers = #tpu.dot_dimension_numbers<[1], [0], [0], [1], [0, 0, 1, 1], [], []>} : vector<8x4xf32>, vector<4x384xf32>, vector<8x384xf32> -> vector<8x384xf32>
    %37 = arith.addf %32, %36 : vector<8x384xf32>
    %38 = vector.extract_strided_slice %1 {offsets = [0, 37], sizes = [4, 384], strides = [1, 1]} : vector<4x522xf32> to vector<4x384xf32>
    %c7 = arith.constant 7 : index
    %c0_24 = arith.constant 0 : index
    %c0_25 = arith.constant 0 : index
    %39 = vector.load %arg3[%c7, %c0_24, %c0_25] : memref<9x8x4xf32, #tpu.memory_space<vmem>>, vector<1x8x4xf32>
    %40 = vector.shape_cast %39 : vector<1x8x4xf32> to vector<8x4xf32>
    %cst_26 = arith.constant dense<0.000000e+00> : vector<8x384xf32>
    %41 = tpu.matmul %40, %38, %cst_26 {dimension_numbers = #tpu.dot_dimension_numbers<[1], [0], [0], [1], [0, 0, 1, 1], [], []>} : vector<8x4xf32>, vector<4x384xf32>, vector<8x384xf32> -> vector<8x384xf32>
    %42 = arith.addf %37, %41 : vector<8x384xf32>
    %43 = vector.extract_strided_slice %1 {offsets = [0, 38], sizes = [4, 384], strides = [1, 1]} : vector<4x522xf32> to vector<4x384xf32>
    %c8 = arith.constant 8 : index
    %c0_27 = arith.constant 0 : index
    %c0_28 = arith.constant 0 : index
    %44 = vector.load %arg3[%c8, %c0_27, %c0_28] : memref<9x8x4xf32, #tpu.memory_space<vmem>>, vector<1x8x4xf32>
    %45 = vector.shape_cast %44 : vector<1x8x4xf32> to vector<8x4xf32>
    %cst_29 = arith.constant dense<0.000000e+00> : vector<8x384xf32>
    %46 = tpu.matmul %45, %43, %cst_29 {dimension_numbers = #tpu.dot_dimension_numbers<[1], [0], [0], [1], [0, 0, 1, 1], [], []>} : vector<8x4xf32>, vector<4x384xf32>, vector<8x384xf32> -> vector<8x384xf32>
    %47 = arith.addf %42, %46 : vector<8x384xf32>
    %c0_30 = arith.constant 0 : index
    %c0_31 = arith.constant 0 : index
    %48 = vector.load %arg4[%c0_30, %c0_31] : memref<8x1xf32, #tpu.memory_space<vmem>>, vector<8x1xf32>
    %49 = vector.broadcast %48 : vector<8x1xf32> to vector<8x384xf32>
    %50 = arith.addf %47, %49 : vector<8x384xf32>
    %c0_32 = arith.constant 0 : index
    %c0_33 = arith.constant 0 : index
    %c0_34 = arith.constant 0 : index
    %51 = vector.load %arg5[%c0_32, %c0_33, %c0_34] : memref<1x8x384xf32, #tpu.memory_space<vmem>>, vector<1x8x384xf32>
    %52 = vector.shape_cast %51 : vector<1x8x384xf32> to vector<8x384xf32>
    %53 = vector.shape_cast %50 : vector<8x384xf32> to vector<1x8x384xf32>
    tpu.vector_store %arg5[%c0_32, %c0_33, %c0_34], %53 {strides = array<i32>} : memref<1x8x384xf32, #tpu.memory_space<vmem>>, vector<1x8x384xf32>,
    return
  }
  func.func @transform_0(%arg0: i32, %arg1: i32) -> (i32, i32, i32) {
    %c0_i32 = arith.constant 0 : i32
    %c0_i32_0 = arith.constant 0 : i32
    %c0_i32_1 = arith.constant 0 : i32
    return %arg0, %c0_i32, %c0_i32_0 : i32, i32, i32
  }
  func.func @transform_1(%arg0: i32, %arg1: i32) -> (i32, i32, i32) {
    %c0_i32 = arith.constant 0 : i32
    %c0_i32_0 = arith.constant 0 : i32
    %c0_i32_1 = arith.constant 0 : i32
    %c0_i32_2 = arith.constant 0 : i32
    return %c0_i32, %c0_i32_0, %c0_i32_1 : i32, i32, i32
  }
  func.func @transform_2(%arg0: i32, %arg1: i32) -> (i32, i32) {
    %c0_i32 = arith.constant 0 : i32
    %c0_i32_0 = arith.constant 0 : i32
    %c0_i32_1 = arith.constant 0 : i32
    return %c0_i32, %c0_i32_0 : i32, i32
  }
  func.func @transform_3(%arg0: i32, %arg1: i32) -> (i32, i32, i32) {
    %c0_i32 = arith.constant 0 : i32
    %c0_i32_0 = arith.constant 0 : i32
    return %arg0, %c0_i32, %arg1 : i32, i32, i32
  }
}

</mosaic_0001>

<llo_original>
// kernel: alter_conv2d.1
$region0: #{alter_conv2d.1}
  #allocation0 [shape = 'u32[]', space=smem, size = 0x4, offset = 0x4, fixed_abs, tag = 'smem constant byte address 0x4 - core index']
  #allocation1 [shape = 'u32[72,128]{1,0:T(1,128)}', space=vmem, size = 0x9000, scoped, tag = 'internal scratch']
  %s0 = inlined_call_operand.vmem [shape: f32[2,4,522], index: 0, kind: input, shape index: {}]
  %s1 = inlined_call_operand.vmem [shape: f32[9,8,4], index: 1, kind: input, shape index: {}]
  %s2 = inlined_call_operand.vmem [shape: f32[8,1], index: 2, kind: input, shape index: {}]
  %s3 = inlined_call_operand.vmem [shape: f32[2,8,384], index: 3, kind: output, shape index: {}]
  %s4 = sld [smem:[#allocation0]]
  $region45: #{alter_conv2d.1} parent=0
    _
  %s6 = ssub.s32 1, %s4
  %s7 = scalar_select 0, %s6, %s4
  loop: start=0, step=1, limit=4
  $region2: #{alter_conv2d.1} parent=0 // loop_pre_header
    _
  $region3: #{alter_conv2d.1} parent=0 // loop_header
    %s9 = sphi 0, %s13
    %p10 = scmp.ge.s32.totalorder %s9, 4
    %s16 = sphi 0, %s28
    %s17 = sphi 0, %s24
    %s18 = sphi 0, %s16
    %s19 = sphi 0, %s17
    %s20 = sphi 0, %s18
    %s21 = sphi 0, %s19
    %s31 = sphi 0, %s33
    %s34 = sphi 0, %s31
    %s35 = sphi 0, %s34
    %s51 = sphi 0, %s35
    %s55 = sphi 0, %s55
    %s57 = sphi 0, %s55
    %s58 = sphi 0, %s57
    %s72 = sphi 0, %s58
    %s76 = sphi 0, %s76
    %s78 = sphi 0, %s76
    %s79 = sphi 0, %s78
    %s93 = sphi 0, %s79
    %s101 = sphi 0, %s103
    %s104 = sphi 0, %s101
    %s105 = sphi 0, %s104
    %s121 = sphi 0, %s105
  $region4: #{alter_conv2d.1} parent=0 // loop_header_branch
    %12 = sbr.rel (%p10) target = $region8
  $region5: #{alter_conv2d.1} parent=0 // loop_body
    %s14 = ssub.s32 %s9, 1
    %s15 = ssub.s32 %s9, 2
    %s22 = sadd.s32 1, %s17
    %p23 = scmp.ge.s32.totalorder %s22, 1
    %s24 = scalar_select %p23, 0, %s22
    %s25 = sadd.s32 1, %s16
    %s26 = scalar_select %p23, %s25, %s16
    %p27 = scmp.ge.s32.totalorder %s26, 2
    %s28 = scalar_select %p27, 0, %s26
    %s29 = ssub.s32 %s16, %s28
    %p30 = scmp.eq.s32.totalorder %s29, 0
    %s32 = sadd.s32 %s31, 1
    %s33 = scalar_select %p30, %s31, %s32
    %p36 = pneg %p30
    %p37 = scmp.eq.s32.totalorder %s9, 1
    %p38 = por %p36, %p37
    %p39 = scmp.ne.s32.totalorder %s31, %s34
    %p40 = scmp.eq.s32.totalorder %s9, 0
    %p41 = por %p39, %p40
    %p42 = scmp.ne.s32.totalorder %s31, %s34
    %p43 = scmp.eq.s32.totalorder %s14, 1
    %p44 = por %p42, %p43
    %p45 = scmp.ne.s32.totalorder %s34, %s35
    %p46 = scmp.eq.s32.totalorder %s14, 0
    %p47 = por %p45, %p46
    %p48 = scmp.ne.s32.totalorder %s34, %s35
    %p49 = scmp.eq.s32.totalorder %s15, 1
    %p50 = por %p48, %p49
    %p52 = scmp.ne.s32.totalorder %s35, %s51
    %p53 = scmp.eq.s32.totalorder %s15, 0
    %p54 = por %p52, %p53
    %s56 = sadd.s32 %s55, 1
    %p59 = scmp.eq.s32.totalorder %s9, 1
    %p60 = scmp.ne.s32.totalorder %s55, %s57
    %p61 = scmp.eq.s32.totalorder %s9, 0
    %p62 = por %p60, %p61
    %p63 = scmp.ne.s32.totalorder %s55, %s57
    %p64 = scmp.eq.s32.totalorder %s14, 1
    %p65 = por %p63, %p64
    %p66 = scmp.ne.s32.totalorder %s57, %s58
    %p67 = scmp.eq.s32.totalorder %s14, 0
    %p68 = por %p66, %p67
    %p69 = scmp.ne.s32.totalorder %s57, %s58
    %p70 = scmp.eq.s32.totalorder %s15, 1
    %p71 = por %p69, %p70
    %p73 = scmp.ne.s32.totalorder %s58, %s72
    %p74 = scmp.eq.s32.totalorder %s15, 0
    %p75 = por %p73, %p74
    %s77 = sadd.s32 %s76, 1
    %p80 = scmp.eq.s32.totalorder %s9, 1
    %p81 = scmp.ne.s32.totalorder %s76, %s78
    %p82 = scmp.eq.s32.totalorder %s9, 0
    %p83 = por %p81, %p82
    %p84 = scmp.ne.s32.totalorder %s76, %s78
    %p85 = scmp.eq.s32.totalorder %s14, 1
    %p86 = por %p84, %p85
    %p87 = scmp.ne.s32.totalorder %s78, %s79
    %p88 = scmp.eq.s32.totalorder %s14, 0
    %p89 = por %p87, %p88
    %p90 = scmp.ne.s32.totalorder %s78, %s79
    %p91 = scmp.eq.s32.totalorder %s15, 1
    %p92 = por %p90, %p91
    %p94 = scmp.ne.s32.totalorder %s79, %s93
    %p95 = scmp.eq.s32.totalorder %s15, 0
    %p96 = por %p94, %p95
    %s97 = ssub.s32 %s16, %s28
    %s98 = ssub.s32 %s17, %s24
    %s99 = sor.u32 %s97, %s98
    %p100 = scmp.eq.s32.totalorder %s99, 0
    %s102 = sadd.s32 %s101, 1
    %s103 = scalar_select %p100, %s101, %s102
    %p106 = pneg %p100
    %p107 = scmp.eq.s32.totalorder %s9, 1
    %p108 = por %p106, %p107
    %p109 = scmp.ne.s32.totalorder %s101, %s104
    %p110 = scmp.eq.s32.totalorder %s9, 0
    %p111 = por %p109, %p110
    %p112 = scmp.ne.s32.totalorder %s101, %s104
    %p113 = scmp.eq.s32.totalorder %s14, 1
    %p114 = por %p112, %p113
    %p115 = scmp.ne.s32.totalorder %s104, %s105
    %p116 = scmp.eq.s32.totalorder %s14, 0
    %p117 = por %p115, %p116
    %p118 = scmp.ne.s32.totalorder %s104, %s105
    %p119 = scmp.eq.s32.totalorder %s15, 1
    %p120 = por %p118, %p119
    %p122 = scmp.ne.s32.totalorder %s105, %s121
    %p123 = scmp.eq.s32.totalorder %s15, 0
    %p124 = por %p122, %p123
    %p125 = scmp.le.s32.totalorder 1, %s9
    %p126 = scmp.lt.s32.totalorder %s9, 3
    %p127 = pnand %p125, %p126
    %p128 = pneg %p127
    // Predicated region
    $region9: #{alter_conv2d.1} parent=5 // pred_check
      _
    $region10: #{alter_conv2d.1} parent=5 // pred_check_branch
      %130 = sbr.rel (%p127) target = $region12
    $region11: #{alter_conv2d.1} parent=5 // pred_region
      %s131 = ssub.s32 %s9, 1
      // Predicated region
      $region13: #{alter_conv2d.1} parent=11 // pred_check
        %p132 = pneg %p68
      $region14: #{alter_conv2d.1} parent=11 // pred_check_branch
        %134 = sbr.rel (%p132) target = $region16
      $region15: #{alter_conv2d.1} parent=11 // pred_region
        _
      $region16: #{alter_conv2d.1} parent=11 // pred_fallthru
        _
      // Predicated region
      $region17: #{alter_conv2d.1} parent=11 // pred_check
        %p135 = pneg %p89
      $region18: #{alter_conv2d.1} parent=11 // pred_check_branch
        %137 = sbr.rel (%p135) target = $region20
      $region19: #{alter_conv2d.1} parent=11 // pred_region
        _
      $region20: #{alter_conv2d.1} parent=11 // pred_fallthru
        _
    $region12: #{alter_conv2d.1} parent=5 // pred_fallthru
      _
    %p138 = scmp.lt.s32.totalorder %s9, 2
    // Predicated region
    $region21: #{alter_conv2d.1} parent=5 // pred_check
      %p139 = pneg %p138
    $region22: #{alter_conv2d.1} parent=5 // pred_check_branch
      %141 = sbr.rel (%p139) target = $region24
    $region23: #{alter_conv2d.1} parent=5 // pred_region
      // Predicated region
      $region25: #{alter_conv2d.1} parent=23 // pred_check
        %p142 = pneg %p41
      $region26: #{alter_conv2d.1} parent=23 // pred_check_branch
        %144 = sbr.rel (%p142) target = $region28
      $region27: #{alter_conv2d.1} parent=23 // pred_region
        %p145 = scmp.lt.s32.totalorder %s16, 1
        %s146 = scalar_select %p145, %s16, 1
        %s147 = smul.addr %s146, 5
        %s148 = smul.addr %s147, 4
        %s149 = scalar_lea.vmem %s0, %s148
      $region28: #{alter_conv2d.1} parent=23 // pred_fallthru
        _
    $region24: #{alter_conv2d.1} parent=5 // pred_fallthru
      _
    %p150 = scmp.le.s32.totalorder 1, %s9
    %p151 = scmp.lt.s32.totalorder %s9, 3
    %p152 = pnand %p150, %p151
    %p153 = pneg %p152
    // Predicated region
    $region29: #{alter_conv2d.1} parent=5 // pred_check
      _
    $region30: #{alter_conv2d.1} parent=5 // pred_check_branch
      %155 = sbr.rel (%p152) target = $region32
    $region31: #{alter_conv2d.1} parent=5 // pred_region
      %s156 = ssub.s32 %s9, 1
      %p157 = scmp.lt.s32.totalorder %s18, 1
      %s158 = scalar_select %p157, %s18, 1
      %s159 = smul.addr %s158, 5
      %s160 = smul.addr %s159, 4
      %s161 = scalar_lea.vmem %s0, %s160
      %p162 = pneg %p47
      %p163 = pneg %p44
      %p164 = pneg %p68
      %p165 = pneg %p65
      %p166 = pneg %p89
      %p167 = pneg %p86
      %p168 = pneg %p117
      %p169 = pneg %p114
      %s170 = smul.u32 3, %s19
      %p171 = scmp.lt.s32.totalorder %s18, 1
      %s172 = scalar_select %p171, %s18, 1
      %p173 = scmp.lt.s32.totalorder %s170, 2
      %s174 = scalar_select %p173, %s170, 2
      %s175 = smul.addr %s172, 3
      %s176 = sadd.s32 %s174, %s175
      %s177 = smul.addr %s176, 8
      %s178 = scalar_lea.vmem %s3, %s177
      %p179 = scmp.lt.s32.totalorder %s18, 1
      %s180 = scalar_select %p179, %s18, 1
      %s181 = smul.addr %s180, 5
      %s182 = smul.addr %s181, 4
      %s183 = scalar_lea.vmem %s0, %s182
      %s184 = smul.u32 3, %s19
      %p185 = scmp.lt.s32.totalorder %s18, 1
      %s186 = scalar_select %p185, %s18, 1
      %p187 = scmp.lt.s32.totalorder %s184, 2
      %s188 = scalar_select %p187, %s184, 2
      %s189 = smul.addr %s186, 3
      %s190 = sadd.s32 %s188, %s189
      %s191 = smul.addr %s190, 8
      %s192 = scalar_lea.vmem %s3, %s191
      %s193 = smul.u32 3, %s19
      %v194 = vld [vmem:[%s183] sm:$0xff]
      %v195 = vld [vmem:[%s183 + $0x8] sm:$0xff]
      %v196 = vld [vmem:[%s1] sm:$0xff]
      %s197 = scalar_lea.vmem %s1, 8
      %v198 = vld [vmem:[%s197] sm:$0xff]
      %201 = vst [vmem:[#allocation1] ss:$2 sm:$0xff] %v194
      %s202 = scalar_lea.vmem [#allocation1], 16
      %203 = vst [vmem:[%s202] ss:$2 sm:$0xff] %v195
      %v204 = vld.sshfl [vmem:[#allocation1] sm:$0xff pattern:$0x75316420]
      %v205 = vld.sshfl [vmem:[#allocation1 + $0x8] sm:$0xff pattern:$0x75316420]
      %v206 = vld.sshfl [vmem:[#allocation1 + $0x10] sm:$0xff pattern:$0x75316420]
      %v207 = vld.sshfl [vmem:[#allocation1 + $0x18] sm:$0xff pattern:$0x75316420]
      %208 = vrot.lane.b32.xlu0 %v204, 127
      %v209 = vpop.permute.xlu0 %208
      %210 = vrot.lane.b32.xlu0 %v205, 127
      %v211 = vpop.permute.xlu0 %210
      %212 = vrot.lane.b32.xlu0 %v206, 127
      %v213 = vpop.permute.xlu0 %212
      %214 = vrot.lane.b32.xlu0 %v207, 127
      %v215 = vpop.permute.xlu0 %214
      %vm216 = vcmask 1039360
      %v217 = vsel %vm216, %v209, %v211
      %v218 = vsel %vm216, %v211, %v213
      %v219 = vsel %vm216, %v213, %v215
      %vm220 = vcmask 31744
      %v222 = vsel %vm220, %v198, 0
      %vm224 = vcmask 1043456
      %v225 = vsel %vm224, %v217, 0
      %v227 = vsel %vm224, %v218, 0
      %v229 = vsel %vm224, %v219, 0
      %231 = vmatpush.msra.mxu0 0.0
      %232 = vmatpush.msra.mxu0 0.0
      %233 = vmatpush.msra.mxu0 0.0
      %234 = vmatpush.msra.mxu0 0.0
      %235 = vmatpush.msra.mxu0 0.0
      %236 = vmatpush.msra.mxu0 0.0
      %237 = vmatpush.msra.mxu0 0.0
      %238 = vmatpush.msra.mxu0 0.0
      %239 = vmatpush.msra.mxu0 0.0
      %240 = vmatpush.msra.mxu0 0.0
      %241 = vmatpush.msra.mxu0 0.0
      %242 = vmatpush.msra.mxu0 0.0
      %243 = vmatpush.msra.mxu0 0.0
      %244 = vmatpush.msra.mxu0 0.0
      %245 = vmatpush.msra.mxu0 0.0
      %246 = vmatpush.msra.mxu0 %v225
      %247 = vmatmul.f32.gmra.mxu0 %v222
      %v248 = vpop.f32.mrf.mxu0
      %v249 = vadd.f32 0.0, %v248
      %250 = vdwg.mxu0
      %251 = vmatpush.msra.mxu0 0.0
      %252 = vmatpush.msra.mxu0 0.0
      %253 = vmatpush.msra.mxu0 0.0
      %254 = vmatpush.msra.mxu0 0.0
      %255 = vmatpush.msra.mxu0 0.0
      %256 = vmatpush.msra.mxu0 0.0
      %257 = vmatpush.msra.mxu0 0.0
      %258 = vmatpush.msra.mxu0 0.0
      %259 = vmatpush.msra.mxu0 0.0
      %260 = vmatpush.msra.mxu0 0.0
      %261 = vmatpush.msra.mxu0 0.0
      %262 = vmatpush.msra.mxu0 0.0
      %263 = vmatpush.msra.mxu0 0.0
      %264 = vmatpush.msra.mxu0 0.0
      %265 = vmatpush.msra.mxu0 0.0
      %266 = vmatpush.msra.mxu0 %v227
      %267 = vmatmul.f32.gmra.mxu0 %v222
      %v268 = vpop.f32.mrf.mxu0
      %v269 = vadd.f32 0.0, %v268
      %270 = vdwg.mxu0
      %271 = vmatpush.msra.mxu0 0.0
      %272 = vmatpush.msra.mxu0 0.0
      %273 = vmatpush.msra.mxu0 0.0
      %274 = vmatpush.msra.mxu0 0.0
      %275 = vmatpush.msra.mxu0 0.0
      %276 = vmatpush.msra.mxu0 0.0
      %277 = vmatpush.msra.mxu0 0.0
      %278 = vmatpush.msra.mxu0 0.0
      %279 = vmatpush.msra.mxu0 0.0
      %280 = vmatpush.msra.mxu0 0.0
      %281 = vmatpush.msra.mxu0 0.0
      %282 = vmatpush.msra.mxu0 0.0
      %283 = vmatpush.msra.mxu0 0.0
      %284 = vmatpush.msra.mxu0 0.0
      %285 = vmatpush.msra.mxu0 0.0
      %286 = vmatpush.msra.mxu0 %v229
      %287 = vmatmul.f32.gmra.mxu0 %v222
      %v288 = vpop.f32.mrf.mxu0
      %v289 = vadd.f32 0.0, %v288
      %290 = vdwg.mxu0
      %291 = vst [vmem:[#allocation1] ss:$2 sm:$0xff] %v194
      %s292 = scalar_lea.vmem [#allocation1], 16
      %293 = vst [vmem:[%s292] ss:$2 sm:$0xff] %v195
      %v294 = vld.sshfl [vmem:[#allocation1] sm:$0xff pattern:$0x75316420]
      %v295 = vld.sshfl [vmem:[#allocation1 + $0x8] sm:$0xff pattern:$0x75316420]
      %v296 = vld.sshfl [vmem:[#allocation1 + $0x10] sm:$0xff pattern:$0x75316420]
      %v298 = vsel %vm220, %v196, 0
      %v300 = vsel %vm224, %v294, 0
      %v302 = vsel %vm224, %v295, 0
      %v304 = vsel %vm224, %v296, 0
      %306 = vmatpush.msra.mxu0 0.0
      %307 = vmatpush.msra.mxu0 0.0
      %308 = vmatpush.msra.mxu0 0.0
      %309 = vmatpush.msra.mxu0 0.0
      %310 = vmatpush.msra.mxu0 0.0
      %311 = vmatpush.msra.mxu0 0.0
      %312 = vmatpush.msra.mxu0 0.0
      %313 = vmatpush.msra.mxu0 0.0
      %314 = vmatpush.msra.mxu0 0.0
      %315 = vmatpush.msra.mxu0 0.0
      %316 = vmatpush.msra.mxu0 0.0
      %317 = vmatpush.msra.mxu0 0.0
      %318 = vmatpush.msra.mxu0 0.0
      %319 = vmatpush.msra.mxu0 0.0
      %320 = vmatpush.msra.mxu0 0.0
      %321 = vmatpush.msra.mxu0 %v300
      %322 = vmatmul.f32.gmra.mxu0 %v298
      %v323 = vpop.f32.mrf.mxu0
      %v324 = vadd.f32 %v249, %v323
      %325 = vdwg.mxu0
      %326 = vmatpush.msra.mxu0 0.0
      %327 = vmatpush.msra.mxu0 0.0
      %328 = vmatpush.msra.mxu0 0.0
      %329 = vmatpush.msra.mxu0 0.0
      %330 = vmatpush.msra.mxu0 0.0
      %331 = vmatpush.msra.mxu0 0.0
      %332 = vmatpush.msra.mxu0 0.0
      %333 = vmatpush.msra.mxu0 0.0
      %334 = vmatpush.msra.mxu0 0.0
      %335 = vmatpush.msra.mxu0 0.0
      %336 = vmatpush.msra.mxu0 0.0
      %337 = vmatpush.msra.mxu0 0.0
      %338 = vmatpush.msra.mxu0 0.0
      %339 = vmatpush.msra.mxu0 0.0
      %340 = vmatpush.msra.mxu0 0.0
      %341 = vmatpush.msra.mxu0 %v302
      %342 = vmatmul.f32.gmra.mxu0 %v298
      %v343 = vpop.f32.mrf.mxu0
      %v344 = vadd.f32 %v269, %v343
      %345 = vdwg.mxu0
      %346 = vmatpush.msra.mxu0 0.0
      %347 = vmatpush.msra.mxu0 0.0
      %348 = vmatpush.msra.mxu0 0.0
      %349 = vmatpush.msra.mxu0 0.0
      %350 = vmatpush.msra.mxu0 0.0
      %351 = vmatpush.msra.mxu0 0.0
      %352 = vmatpush.msra.mxu0 0.0
      %353 = vmatpush.msra.mxu0 0.0
      %354 = vmatpush.msra.mxu0 0.0
      %355 = vmatpush.msra.mxu0 0.0
      %356 = vmatpush.msra.mxu0 0.0
      %357 = vmatpush.msra.mxu0 0.0
      %358 = vmatpush.msra.mxu0 0.0
      %359 = vmatpush.msra.mxu0 0.0
      %360 = vmatpush.msra.mxu0 0.0
      %361 = vmatpush.msra.mxu0 %v304
      %362 = vmatmul.f32.gmra.mxu0 %v298
      %v363 = vpop.f32.mrf.mxu0
      %v364 = vadd.f32 %v289, %v363
      %365 = vdwg.mxu0
      %s366 = scalar_lea.vmem %s1, 16
      %v367 = vld [vmem:[%s366] sm:$0xff]
      %368 = vst [vmem:[#allocation1] ss:$2 sm:$0xff] %v194
      %s369 = scalar_lea.vmem [#allocation1], 16
      %370 = vst [vmem:[%s369] ss:$2 sm:$0xff] %v195
      %v371 = vld.sshfl [vmem:[#allocation1] sm:$0xff pattern:$0x75316420]
      %v372 = vld.sshfl [vmem:[#allocation1 + $0x8] sm:$0xff pattern:$0x75316420]
      %v373 = vld.sshfl [vmem:[#allocation1 + $0x10] sm:$0xff pattern:$0x75316420]
      %v374 = vld.sshfl [vmem:[#allocation1 + $0x18] sm:$0xff pattern:$0x75316420]
      %375 = vrot.lane.b32.xlu0 %v371, 126
      %v376 = vpop.permute.xlu0 %375
      %377 = vrot.lane.b32.xlu0 %v372, 126
      %v378 = vpop.permute.xlu0 %377
      %379 = vrot.lane.b32.xlu0 %v373, 126
      %v380 = vpop.permute.xlu0 %379
      %381 = vrot.lane.b32.xlu0 %v374, 126
      %v382 = vpop.permute.xlu0 %381
      %vm383 = vcmask 1031168
      %v384 = vsel %vm383, %v376, %v378
      %v385 = vsel %vm383, %v378, %v380
      %v386 = vsel %vm383, %v380, %v382
      %v388 = vsel %vm220, %v367, 0
      %v390 = vsel %vm224, %v384, 0
      %v392 = vsel %vm224, %v385, 0
      %v394 = vsel %vm224, %v386, 0
      %396 = vmatpush.msra.mxu0 0.0
      %397 = vmatpush.msra.mxu0 0.0
      %398 = vmatpush.msra.mxu0 0.0
      %399 = vmatpush.msra.mxu0 0.0
      %400 = vmatpush.msra.mxu0 0.0
      %401 = vmatpush.msra.mxu0 0.0
      %402 = vmatpush.msra.mxu0 0.0
      %403 = vmatpush.msra.mxu0 0.0
      %404 = vmatpush.msra.mxu0 0.0
      %405 = vmatpush.msra.mxu0 0.0
      %406 = vmatpush.msra.mxu0 0.0
      %407 = vmatpush.msra.mxu0 0.0
      %408 = vmatpush.msra.mxu0 0.0
      %409 = vmatpush.msra.mxu0 0.0
      %410 = vmatpush.msra.mxu0 0.0
      %411 = vmatpush.msra.mxu0 %v390
      %412 = vmatmul.f32.gmra.mxu0 %v388
      %v413 = vpop.f32.mrf.mxu0
      %v414 = vadd.f32 0.0, %v413
      %415 = vdwg.mxu0
      %416 = vmatpush.msra.mxu0 0.0
      %417 = vmatpush.msra.mxu0 0.0
      %418 = vmatpush.msra.mxu0 0.0
      %419 = vmatpush.msra.mxu0 0.0
      %420 = vmatpush.msra.mxu0 0.0
      %421 = vmatpush.msra.mxu0 0.0
      %422 = vmatpush.msra.mxu0 0.0
      %423 = vmatpush.msra.mxu0 0.0
      %424 = vmatpush.msra.mxu0 0.0
      %425 = vmatpush.msra.mxu0 0.0
      %426 = vmatpush.msra.mxu0 0.0
      %427 = vmatpush.msra.mxu0 0.0
      %428 = vmatpush.msra.mxu0 0.0
      %429 = vmatpush.msra.mxu0 0.0
      %430 = vmatpush.msra.mxu0 0.0
      %431 = vmatpush.msra.mxu0 %v392
      %432 = vmatmul.f32.gmra.mxu0 %v388
      %v433 = vpop.f32.mrf.mxu0
      %v434 = vadd.f32 0.0, %v433
      %435 = vdwg.mxu0
      %436 = vmatpush.msra.mxu0 0.0
      %437 = vmatpush.msra.mxu0 0.0
      %438 = vmatpush.msra.mxu0 0.0
      %439 = vmatpush.msra.mxu0 0.0
      %440 = vmatpush.msra.mxu0 0.0
      %441 = vmatpush.msra.mxu0 0.0
      %442 = vmatpush.msra.mxu0 0.0
      %443 = vmatpush.msra.mxu0 0.0
      %444 = vmatpush.msra.mxu0 0.0
      %445 = vmatpush.msra.mxu0 0.0
      %446 = vmatpush.msra.mxu0 0.0
      %447 = vmatpush.msra.mxu0 0.0
      %448 = vmatpush.msra.mxu0 0.0
      %449 = vmatpush.msra.mxu0 0.0
      %450 = vmatpush.msra.mxu0 0.0
      %451 = vmatpush.msra.mxu0 %v394
      %452 = vmatmul.f32.gmra.mxu0 %v388
      %v453 = vpop.f32.mrf.mxu0
      %v454 = vadd.f32 0.0, %v453
      %455 = vdwg.mxu0
      %v456 = vadd.f32 %v324, %v414
      %v457 = vadd.f32 %v344, %v434
      %v458 = vadd.f32 %v364, %v454
      %s459 = scalar_lea.vmem %s1, 24
      %v460 = vld [vmem:[%s459] sm:$0xff]
      %461 = vst [vmem:[#allocation1] ss:$2 sm:$0xff] %v194
      %s462 = scalar_lea.vmem [#allocation1], 16
      %463 = vst [vmem:[%s462] ss:$2 sm:$0xff] %v195
      %v464 = vld.sshfl [vmem:[#allocation1] sm:$0xff pattern:$0x75316420]
      %v465 = vld.sshfl [vmem:[#allocation1 + $0x8] sm:$0xff pattern:$0x75316420]
      %v466 = vld.sshfl [vmem:[#allocation1 + $0x10] sm:$0xff pattern:$0x75316420]
      %v467 = vld.sshfl [vmem:[#allocation1 + $0x18] sm:$0xff pattern:$0x75316420]
      %468 = vrot.lane.b32.xlu0 %v464, 110
      %v469 = vpop.permute.xlu0 %468
      %470 = vrot.lane.b32.xlu0 %v465, 110
      %v471 = vpop.permute.xlu0 %470
      %472 = vrot.lane.b32.xlu0 %v466, 110
      %v473 = vpop.permute.xlu0 %472
      %474 = vrot.lane.b32.xlu0 %v467, 110
      %v475 = vpop.permute.xlu0 %474
      %vm476 = vcmask 900096
      %v477 = vsel %vm476, %v469, %v471
      %v478 = vsel %vm476, %v471, %v473
      %v479 = vsel %vm476, %v473, %v475
      %v481 = vsel %vm220, %v460, 0
      %v483 = vsel %vm224, %v477, 0
      %v485 = vsel %vm224, %v478, 0
      %v487 = vsel %vm224, %v479, 0
      %489 = vmatpush.msra.mxu0 0.0
      %490 = vmatpush.msra.mxu0 0.0
      %491 = vmatpush.msra.mxu0 0.0
      %492 = vmatpush.msra.mxu0 0.0
      %493 = vmatpush.msra.mxu0 0.0
      %494 = vmatpush.msra.mxu0 0.0
      %495 = vmatpush.msra.mxu0 0.0
      %496 = vmatpush.msra.mxu0 0.0
      %497 = vmatpush.msra.mxu0 0.0
      %498 = vmatpush.msra.mxu0 0.0
      %499 = vmatpush.msra.mxu0 0.0
      %500 = vmatpush.msra.mxu0 0.0
      %501 = vmatpush.msra.mxu0 0.0
      %502 = vmatpush.msra.mxu0 0.0
      %503 = vmatpush.msra.mxu0 0.0
      %504 = vmatpush.msra.mxu0 %v483
      %505 = vmatmul.f32.gmra.mxu0 %v481
      %v506 = vpop.f32.mrf.mxu0
      %v507 = vadd.f32 0.0, %v506
      %508 = vdwg.mxu0
      %509 = vmatpush.msra.mxu0 0.0
      %510 = vmatpush.msra.mxu0 0.0
      %511 = vmatpush.msra.mxu0 0.0
      %512 = vmatpush.msra.mxu0 0.0
      %513 = vmatpush.msra.mxu0 0.0
      %514 = vmatpush.msra.mxu0 0.0
      %515 = vmatpush.msra.mxu0 0.0
      %516 = vmatpush.msra.mxu0 0.0
      %517 = vmatpush.msra.mxu0 0.0
      %518 = vmatpush.msra.mxu0 0.0
      %519 = vmatpush.msra.mxu0 0.0
      %520 = vmatpush.msra.mxu0 0.0
      %521 = vmatpush.msra.mxu0 0.0
      %522 = vmatpush.msra.mxu0 0.0
      %523 = vmatpush.msra.mxu0 0.0
      %524 = vmatpush.msra.mxu0 %v485
      %525 = vmatmul.f32.gmra.mxu0 %v481
      %v526 = vpop.f32.mrf.mxu0
      %v527 = vadd.f32 0.0, %v526
      %528 = vdwg.mxu0
      %529 = vmatpush.msra.mxu0 0.0
      %530 = vmatpush.msra.mxu0 0.0
      %531 = vmatpush.msra.mxu0 0.0
      %532 = vmatpush.msra.mxu0 0.0
      %533 = vmatpush.msra.mxu0 0.0
      %534 = vmatpush.msra.mxu0 0.0
      %535 = vmatpush.msra.mxu0 0.0
      %536 = vmatpush.msra.mxu0 0.0
      %537 = vmatpush.msra.mxu0 0.0
      %538 = vmatpush.msra.mxu0 0.0
      %539 = vmatpush.msra.mxu0 0.0
      %540 = vmatpush.msra.mxu0 0.0
      %541 = vmatpush.msra.mxu0 0.0
      %542 = vmatpush.msra.mxu0 0.0
      %543 = vmatpush.msra.mxu0 0.0
      %544 = vmatpush.msra.mxu0 %v487
      %545 = vmatmul.f32.gmra.mxu0 %v481
      %v546 = vpop.f32.mrf.mxu0
      %v547 = vadd.f32 0.0, %v546
      %548 = vdwg.mxu0
      %v549 = vadd.f32 %v456, %v507
      %v550 = vadd.f32 %v457, %v527
      %v551 = vadd.f32 %v458, %v547
      %s552 = scalar_lea.vmem %s1, 32
      %v553 = vld [vmem:[%s552] sm:$0xff]
      %554 = vst [vmem:[#allocation1] ss:$2 sm:$0xff] %v194
      %s555 = scalar_lea.vmem [#allocation1], 16
      %556 = vst [vmem:[%s555] ss:$2 sm:$0xff] %v195
      %v557 = vld.sshfl [vmem:[#allocation1] sm:$0xff pattern:$0x75316420]
      %v558 = vld.sshfl [vmem:[#allocation1 + $0x8] sm:$0xff pattern:$0x75316420]
      %v559 = vld.sshfl [vmem:[#allocation1 + $0x10] sm:$0xff pattern:$0x75316420]
      %v560 = vld.sshfl [vmem:[#allocation1 + $0x18] sm:$0xff pattern:$0x75316420]
      %561 = vrot.lane.b32.xlu0 %v557, 109
      %v562 = vpop.permute.xlu0 %561
      %563 = vrot.lane.b32.xlu0 %v558, 109
      %v564 = vpop.permute.xlu0 %563
      %565 = vrot.lane.b32.xlu0 %v559, 109
      %v566 = vpop.permute.xlu0 %565
      %567 = vrot.lane.b32.xlu0 %v560, 109
      %v568 = vpop.permute.xlu0 %567
      %vm569 = vcmask 891904
      %v570 = vsel %vm569, %v562, %v564
      %v571 = vsel %vm569, %v564, %v566
      %v572 = vsel %vm569, %v566, %v568
      %v574 = vsel %vm220, %v553, 0
      %v576 = vsel %vm224, %v570, 0
      %v578 = vsel %vm224, %v571, 0
      %v580 = vsel %vm224, %v572, 0
      %582 = vmatpush.msra.mxu0 0.0
      %583 = vmatpush.msra.mxu0 0.0
      %584 = vmatpush.msra.mxu0 0.0
      %585 = vmatpush.msra.mxu0 0.0
      %586 = vmatpush.msra.mxu0 0.0
      %587 = vmatpush.msra.mxu0 0.0
      %588 = vmatpush.msra.mxu0 0.0
      %589 = vmatpush.msra.mxu0 0.0
      %590 = vmatpush.msra.mxu0 0.0
      %591 = vmatpush.msra.mxu0 0.0
      %592 = vmatpush.msra.mxu0 0.0
      %593 = vmatpush.msra.mxu0 0.0
      %594 = vmatpush.msra.mxu0 0.0
      %595 = vmatpush.msra.mxu0 0.0
      %596 = vmatpush.msra.mxu0 0.0
      %597 = vmatpush.msra.mxu0 %v576
      %598 = vmatmul.f32.gmra.mxu0 %v574
      %v599 = vpop.f32.mrf.mxu0
      %v600 = vadd.f32 0.0, %v599
      %601 = vdwg.mxu0
      %602 = vmatpush.msra.mxu0 0.0
      %603 = vmatpush.msra.mxu0 0.0
      %604 = vmatpush.msra.mxu0 0.0
      %605 = vmatpush.msra.mxu0 0.0
      %606 = vmatpush.msra.mxu0 0.0
      %607 = vmatpush.msra.mxu0 0.0
      %608 = vmatpush.msra.mxu0 0.0
      %609 = vmatpush.msra.mxu0 0.0
      %610 = vmatpush.msra.mxu0 0.0
      %611 = vmatpush.msra.mxu0 0.0
      %612 = vmatpush.msra.mxu0 0.0
      %613 = vmatpush.msra.mxu0 0.0
      %614 = vmatpush.msra.mxu0 0.0
      %615 = vmatpush.msra.mxu0 0.0
      %616 = vmatpush.msra.mxu0 0.0
      %617 = vmatpush.msra.mxu0 %v578
      %618 = vmatmul.f32.gmra.mxu0 %v574
      %v619 = vpop.f32.mrf.mxu0
      %v620 = vadd.f32 0.0, %v619
      %621 = vdwg.mxu0
      %622 = vmatpush.msra.mxu0 0.0
      %623 = vmatpush.msra.mxu0 0.0
      %624 = vmatpush.msra.mxu0 0.0
      %625 = vmatpush.msra.mxu0 0.0
      %626 = vmatpush.msra.mxu0 0.0
      %627 = vmatpush.msra.mxu0 0.0
      %628 = vmatpush.msra.mxu0 0.0
      %629 = vmatpush.msra.mxu0 0.0
      %630 = vmatpush.msra.mxu0 0.0
      %631 = vmatpush.msra.mxu0 0.0
      %632 = vmatpush.msra.mxu0 0.0
      %633 = vmatpush.msra.mxu0 0.0
      %634 = vmatpush.msra.mxu0 0.0
      %635 = vmatpush.msra.mxu0 0.0
      %636 = vmatpush.msra.mxu0 0.0
      %637 = vmatpush.msra.mxu0 %v580
      %638 = vmatmul.f32.gmra.mxu0 %v574
      %v639 = vpop.f32.mrf.mxu0
      %v640 = vadd.f32 0.0, %v639
      %641 = vdwg.mxu0
      %v642 = vadd.f32 %v549, %v600
      %v643 = vadd.f32 %v550, %v620
      %v644 = vadd.f32 %v551, %v640
      %s645 = scalar_lea.vmem %s1, 40
      %v646 = vld [vmem:[%s645] sm:$0xff]
      %647 = vst [vmem:[#allocation1] ss:$2 sm:$0xff] %v194
      %s648 = scalar_lea.vmem [#allocation1], 16
      %649 = vst [vmem:[%s648] ss:$2 sm:$0xff] %v195
      %v650 = vld.sshfl [vmem:[#allocation1] sm:$0xff pattern:$0x75316420]
      %v651 = vld.sshfl [vmem:[#allocation1 + $0x8] sm:$0xff pattern:$0x75316420]
      %v652 = vld.sshfl [vmem:[#allocation1 + $0x10] sm:$0xff pattern:$0x75316420]
      %v653 = vld.sshfl [vmem:[#allocation1 + $0x18] sm:$0xff pattern:$0x75316420]
      %654 = vrot.lane.b32.xlu0 %v650, 108
      %v655 = vpop.permute.xlu0 %654
      %656 = vrot.lane.b32.xlu0 %v651, 108
      %v657 = vpop.permute.xlu0 %656
      %658 = vrot.lane.b32.xlu0 %v652, 108
      %v659 = vpop.permute.xlu0 %658
      %660 = vrot.lane.b32.xlu0 %v653, 108
      %v661 = vpop.permute.xlu0 %660
      %vm662 = vcmask 883712
      %v663 = vsel %vm662, %v655, %v657
      %v664 = vsel %vm662, %v657, %v659
      %v665 = vsel %vm662, %v659, %v661
      %v667 = vsel %vm220, %v646, 0
      %v669 = vsel %vm224, %v663, 0
      %v671 = vsel %vm224, %v664, 0
      %v673 = vsel %vm224, %v665, 0
      %675 = vmatpush.msra.mxu0 0.0
      %676 = vmatpush.msra.mxu0 0.0
      %677 = vmatpush.msra.mxu0 0.0
      %678 = vmatpush.msra.mxu0 0.0
      %679 = vmatpush.msra.mxu0 0.0
      %680 = vmatpush.msra.mxu0 0.0
      %681 = vmatpush.msra.mxu0 0.0
      %682 = vmatpush.msra.mxu0 0.0
      %683 = vmatpush.msra.mxu0 0.0
      %684 = vmatpush.msra.mxu0 0.0
      %685 = vmatpush.msra.mxu0 0.0
      %686 = vmatpush.msra.mxu0 0.0
      %687 = vmatpush.msra.mxu0 0.0
      %688 = vmatpush.msra.mxu0 0.0
      %689 = vmatpush.msra.mxu0 0.0
      %690 = vmatpush.msra.mxu0 %v669
      %691 = vmatmul.f32.gmra.mxu0 %v667
      %v692 = vpop.f32.mrf.mxu0
      %v693 = vadd.f32 0.0, %v692
      %694 = vdwg.mxu0
      %695 = vmatpush.msra.mxu0 0.0
      %696 = vmatpush.msra.mxu0 0.0
      %697 = vmatpush.msra.mxu0 0.0
      %698 = vmatpush.msra.mxu0 0.0
      %699 = vmatpush.msra.mxu0 0.0
      %700 = vmatpush.msra.mxu0 0.0
      %701 = vmatpush.msra.mxu0 0.0
      %702 = vmatpush.msra.mxu0 0.0
      %703 = vmatpush.msra.mxu0 0.0
      %704 = vmatpush.msra.mxu0 0.0
      %705 = vmatpush.msra.mxu0 0.0
      %706 = vmatpush.msra.mxu0 0.0
      %707 = vmatpush.msra.mxu0 0.0
      %708 = vmatpush.msra.mxu0 0.0
      %709 = vmatpush.msra.mxu0 0.0
      %710 = vmatpush.msra.mxu0 %v671
      %711 = vmatmul.f32.gmra.mxu0 %v667
      %v712 = vpop.f32.mrf.mxu0
      %v713 = vadd.f32 0.0, %v712
      %714 = vdwg.mxu0
      %715 = vmatpush.msra.mxu0 0.0
      %716 = vmatpush.msra.mxu0 0.0
      %717 = vmatpush.msra.mxu0 0.0
      %718 = vmatpush.msra.mxu0 0.0
      %719 = vmatpush.msra.mxu0 0.0
      %720 = vmatpush.msra.mxu0 0.0
      %721 = vmatpush.msra.mxu0 0.0
      %722 = vmatpush.msra.mxu0 0.0
      %723 = vmatpush.msra.mxu0 0.0
      %724 = vmatpush.msra.mxu0 0.0
      %725 = vmatpush.msra.mxu0 0.0
      %726 = vmatpush.msra.mxu0 0.0
      %727 = vmatpush.msra.mxu0 0.0
      %728 = vmatpush.msra.mxu0 0.0
      %729 = vmatpush.msra.mxu0 0.0
      %730 = vmatpush.msra.mxu0 %v673
      %731 = vmatmul.f32.gmra.mxu0 %v667
      %v732 = vpop.f32.mrf.mxu0
      %v733 = vadd.f32 0.0, %v732
      %734 = vdwg.mxu0
      %v735 = vadd.f32 %v642, %v693
      %v736 = vadd.f32 %v643, %v713
      %v737 = vadd.f32 %v644, %v733
      %s738 = scalar_lea.vmem %s1, 48
      %v739 = vld [vmem:[%s738] sm:$0xff]
      %740 = vst [vmem:[#allocation1] ss:$2 sm:$0xff] %v194
      %s741 = scalar_lea.vmem [#allocation1], 16
      %742 = vst [vmem:[%s741] ss:$2 sm:$0xff] %v195
      %v743 = vld.sshfl [vmem:[#allocation1] sm:$0xff pattern:$0x75316420]
      %v744 = vld.sshfl [vmem:[#allocation1 + $0x8] sm:$0xff pattern:$0x75316420]
      %v745 = vld.sshfl [vmem:[#allocation1 + $0x10] sm:$0xff pattern:$0x75316420]
      %v746 = vld.sshfl [vmem:[#allocation1 + $0x18] sm:$0xff pattern:$0x75316420]
      %747 = vrot.lane.b32.xlu0 %v743, 92
      %v748 = vpop.permute.xlu0 %747
      %749 = vrot.lane.b32.xlu0 %v744, 92
      %v750 = vpop.permute.xlu0 %749
      %751 = vrot.lane.b32.xlu0 %v745, 92
      %v752 = vpop.permute.xlu0 %751
      %753 = vrot.lane.b32.xlu0 %v746, 92
      %v754 = vpop.permute.xlu0 %753
      %vm755 = vcmask 752640
      %v756 = vsel %vm755, %v748, %v750
      %v757 = vsel %vm755, %v750, %v752
      %v758 = vsel %vm755, %v752, %v754
      %v760 = vsel %vm220, %v739, 0
      %v762 = vsel %vm224, %v756, 0
      %v764 = vsel %vm224, %v757, 0
      %v766 = vsel %vm224, %v758, 0
      %768 = vmatpush.msra.mxu0 0.0
      %769 = vmatpush.msra.mxu0 0.0
      %770 = vmatpush.msra.mxu0 0.0
      %771 = vmatpush.msra.mxu0 0.0
      %772 = vmatpush.msra.mxu0 0.0
      %773 = vmatpush.msra.mxu0 0.0
      %774 = vmatpush.msra.mxu0 0.0
      %775 = vmatpush.msra.mxu0 0.0
      %776 = vmatpush.msra.mxu0 0.0
      %777 = vmatpush.msra.mxu0 0.0
      %778 = vmatpush.msra.mxu0 0.0
      %779 = vmatpush.msra.mxu0 0.0
      %780 = vmatpush.msra.mxu0 0.0
      %781 = vmatpush.msra.mxu0 0.0
      %782 = vmatpush.msra.mxu0 0.0
      %783 = vmatpush.msra.mxu0 %v762
      %784 = vmatmul.f32.gmra.mxu0 %v760
      %v785 = vpop.f32.mrf.mxu0
      %v786 = vadd.f32 0.0, %v785
      %787 = vdwg.mxu0
      %788 = vmatpush.msra.mxu0 0.0
      %789 = vmatpush.msra.mxu0 0.0
      %790 = vmatpush.msra.mxu0 0.0
      %791 = vmatpush.msra.mxu0 0.0
      %792 = vmatpush.msra.mxu0 0.0
      %793 = vmatpush.msra.mxu0 0.0
      %794 = vmatpush.msra.mxu0 0.0
      %795 = vmatpush.msra.mxu0 0.0
      %796 = vmatpush.msra.mxu0 0.0
      %797 = vmatpush.msra.mxu0 0.0
      %798 = vmatpush.msra.mxu0 0.0
      %799 = vmatpush.msra.mxu0 0.0
      %800 = vmatpush.msra.mxu0 0.0
      %801 = vmatpush.msra.mxu0 0.0
      %802 = vmatpush.msra.mxu0 0.0
      %803 = vmatpush.msra.mxu0 %v764
      %804 = vmatmul.f32.gmra.mxu0 %v760
      %v805 = vpop.f32.mrf.mxu0
      %v806 = vadd.f32 0.0, %v805
      %807 = vdwg.mxu0
      %808 = vmatpush.msra.mxu0 0.0
      %809 = vmatpush.msra.mxu0 0.0
      %810 = vmatpush.msra.mxu0 0.0
      %811 = vmatpush.msra.mxu0 0.0
      %812 = vmatpush.msra.mxu0 0.0
      %813 = vmatpush.msra.mxu0 0.0
      %814 = vmatpush.msra.mxu0 0.0
      %815 = vmatpush.msra.mxu0 0.0
      %816 = vmatpush.msra.mxu0 0.0
      %817 = vmatpush.msra.mxu0 0.0
      %818 = vmatpush.msra.mxu0 0.0
      %819 = vmatpush.msra.mxu0 0.0
      %820 = vmatpush.msra.mxu0 0.0
      %821 = vmatpush.msra.mxu0 0.0
      %822 = vmatpush.msra.mxu0 0.0
      %823 = vmatpush.msra.mxu0 %v766
      %824 = vmatmul.f32.gmra.mxu0 %v760
      %v825 = vpop.f32.mrf.mxu0
      %v826 = vadd.f32 0.0, %v825
      %827 = vdwg.mxu0
      %v828 = vadd.f32 %v735, %v786
      %v829 = vadd.f32 %v736, %v806
      %v830 = vadd.f32 %v737, %v826
      %s831 = scalar_lea.vmem %s1, 56
      %v832 = vld [vmem:[%s831] sm:$0xff]
      %833 = vst [vmem:[#allocation1] ss:$2 sm:$0xff] %v194
      %s834 = scalar_lea.vmem [#allocation1], 16
      %835 = vst [vmem:[%s834] ss:$2 sm:$0xff] %v195
      %v836 = vld.sshfl [vmem:[#allocation1] sm:$0xff pattern:$0x75316420]
      %v837 = vld.sshfl [vmem:[#allocation1 + $0x8] sm:$0xff pattern:$0x75316420]
      %v838 = vld.sshfl [vmem:[#allocation1 + $0x10] sm:$0xff pattern:$0x75316420]
      %v839 = vld.sshfl [vmem:[#allocation1 + $0x18] sm:$0xff pattern:$0x75316420]
      %840 = vrot.lane.b32.xlu0 %v836, 91
      %v841 = vpop.permute.xlu0 %840
      %842 = vrot.lane.b32.xlu0 %v837, 91
      %v843 = vpop.permute.xlu0 %842
      %844 = vrot.lane.b32.xlu0 %v838, 91
      %v845 = vpop.permute.xlu0 %844
      %846 = vrot.lane.b32.xlu0 %v839, 91
      %v847 = vpop.permute.xlu0 %846
      %vm848 = vcmask 744448
      %v849 = vsel %vm848, %v841, %v843
      %v850 = vsel %vm848, %v843, %v845
      %v851 = vsel %vm848, %v845, %v847
      %v853 = vsel %vm220, %v832, 0
      %v855 = vsel %vm224, %v849, 0
      %v857 = vsel %vm224, %v850, 0
      %v859 = vsel %vm224, %v851, 0
      %861 = vmatpush.msra.mxu0 0.0
      %862 = vmatpush.msra.mxu0 0.0
      %863 = vmatpush.msra.mxu0 0.0
      %864 = vmatpush.msra.mxu0 0.0
      %865 = vmatpush.msra.mxu0 0.0
      %866 = vmatpush.msra.mxu0 0.0
      %867 = vmatpush.msra.mxu0 0.0
      %868 = vmatpush.msra.mxu0 0.0
      %869 = vmatpush.msra.mxu0 0.0
      %870 = vmatpush.msra.mxu0 0.0
      %871 = vmatpush.msra.mxu0 0.0
      %872 = vmatpush.msra.mxu0 0.0
      %873 = vmatpush.msra.mxu0 0.0
      %874 = vmatpush.msra.mxu0 0.0
      %875 = vmatpush.msra.mxu0 0.0
      %876 = vmatpush.msra.mxu0 %v855
      %877 = vmatmul.f32.gmra.mxu0 %v853
      %v878 = vpop.f32.mrf.mxu0
      %v879 = vadd.f32 0.0, %v878
      %880 = vdwg.mxu0
      %881 = vmatpush.msra.mxu0 0.0
      %882 = vmatpush.msra.mxu0 0.0
      %883 = vmatpush.msra.mxu0 0.0
      %884 = vmatpush.msra.mxu0 0.0
      %885 = vmatpush.msra.mxu0 0.0
      %886 = vmatpush.msra.mxu0 0.0
      %887 = vmatpush.msra.mxu0 0.0
      %888 = vmatpush.msra.mxu0 0.0
      %889 = vmatpush.msra.mxu0 0.0
      %890 = vmatpush.msra.mxu0 0.0
      %891 = vmatpush.msra.mxu0 0.0
      %892 = vmatpush.msra.mxu0 0.0
      %893 = vmatpush.msra.mxu0 0.0
      %894 = vmatpush.msra.mxu0 0.0
      %895 = vmatpush.msra.mxu0 0.0
      %896 = vmatpush.msra.mxu0 %v857
      %897 = vmatmul.f32.gmra.mxu0 %v853
      %v898 = vpop.f32.mrf.mxu0
      %v899 = vadd.f32 0.0, %v898
      %900 = vdwg.mxu0
      %901 = vmatpush.msra.mxu0 0.0
      %902 = vmatpush.msra.mxu0 0.0
      %903 = vmatpush.msra.mxu0 0.0
      %904 = vmatpush.msra.mxu0 0.0
      %905 = vmatpush.msra.mxu0 0.0
      %906 = vmatpush.msra.mxu0 0.0
      %907 = vmatpush.msra.mxu0 0.0
      %908 = vmatpush.msra.mxu0 0.0
      %909 = vmatpush.msra.mxu0 0.0
      %910 = vmatpush.msra.mxu0 0.0
      %911 = vmatpush.msra.mxu0 0.0
      %912 = vmatpush.msra.mxu0 0.0
      %913 = vmatpush.msra.mxu0 0.0
      %914 = vmatpush.msra.mxu0 0.0
      %915 = vmatpush.msra.mxu0 0.0
      %916 = vmatpush.msra.mxu0 %v859
      %917 = vmatmul.f32.gmra.mxu0 %v853
      %v918 = vpop.f32.mrf.mxu0
      %v919 = vadd.f32 0.0, %v918
      %920 = vdwg.mxu0
      %v921 = vadd.f32 %v828, %v879
      %v922 = vadd.f32 %v829, %v899
      %v923 = vadd.f32 %v830, %v919
      %s924 = scalar_lea.vmem %s1, 64
      %v925 = vld [vmem:[%s924] sm:$0xff]
      %926 = vst [vmem:[#allocation1] ss:$2 sm:$0xff] %v194
      %s927 = scalar_lea.vmem [#allocation1], 16
      %928 = vst [vmem:[%s927] ss:$2 sm:$0xff] %v195
      %v929 = vld.sshfl [vmem:[#allocation1] sm:$0xff pattern:$0x75316420]
      %v930 = vld.sshfl [vmem:[#allocation1 + $0x8] sm:$0xff pattern:$0x75316420]
      %v931 = vld.sshfl [vmem:[#allocation1 + $0x10] sm:$0xff pattern:$0x75316420]
      %v932 = vld.sshfl [vmem:[#allocation1 + $0x18] sm:$0xff pattern:$0x75316420]
      %933 = vrot.lane.b32.xlu0 %v929, 90
      %v934 = vpop.permute.xlu0 %933
      %935 = vrot.lane.b32.xlu0 %v930, 90
      %v936 = vpop.permute.xlu0 %935
      %937 = vrot.lane.b32.xlu0 %v931, 90
      %v938 = vpop.permute.xlu0 %937
      %939 = vrot.lane.b32.xlu0 %v932, 90
      %v940 = vpop.permute.xlu0 %939
      %vm941 = vcmask 736256
      %v942 = vsel %vm941, %v934, %v936
      %v943 = vsel %vm941, %v936, %v938
      %v944 = vsel %vm941, %v938, %v940
      %v946 = vsel %vm220, %v925, 0
      %v948 = vsel %vm224, %v942, 0
      %v950 = vsel %vm224, %v943, 0
      %v952 = vsel %vm224, %v944, 0
      %954 = vmatpush.msra.mxu0 0.0
      %955 = vmatpush.msra.mxu0 0.0
      %956 = vmatpush.msra.mxu0 0.0
      %957 = vmatpush.msra.mxu0 0.0
      %958 = vmatpush.msra.mxu0 0.0
      %959 = vmatpush.msra.mxu0 0.0
      %960 = vmatpush.msra.mxu0 0.0
      %961 = vmatpush.msra.mxu0 0.0
      %962 = vmatpush.msra.mxu0 0.0
      %963 = vmatpush.msra.mxu0 0.0
      %964 = vmatpush.msra.mxu0 0.0
      %965 = vmatpush.msra.mxu0 0.0
      %966 = vmatpush.msra.mxu0 0.0
      %967 = vmatpush.msra.mxu0 0.0
      %968 = vmatpush.msra.mxu0 0.0
      %969 = vmatpush.msra.mxu0 %v948
      %970 = vmatmul.f32.gmra.mxu0 %v946
      %v971 = vpop.f32.mrf.mxu0
      %v972 = vadd.f32 0.0, %v971
      %973 = vdwg.mxu0
      %974 = vmatpush.msra.mxu0 0.0
      %975 = vmatpush.msra.mxu0 0.0
      %976 = vmatpush.msra.mxu0 0.0
      %977 = vmatpush.msra.mxu0 0.0
      %978 = vmatpush.msra.mxu0 0.0
      %979 = vmatpush.msra.mxu0 0.0
      %980 = vmatpush.msra.mxu0 0.0
      %981 = vmatpush.msra.mxu0 0.0
      %982 = vmatpush.msra.mxu0 0.0
      %983 = vmatpush.msra.mxu0 0.0
      %984 = vmatpush.msra.mxu0 0.0
      %985 = vmatpush.msra.mxu0 0.0
      %986 = vmatpush.msra.mxu0 0.0
      %987 = vmatpush.msra.mxu0 0.0
      %988 = vmatpush.msra.mxu0 0.0
      %989 = vmatpush.msra.mxu0 %v950
      %990 = vmatmul.f32.gmra.mxu0 %v946
      %v991 = vpop.f32.mrf.mxu0
      %v992 = vadd.f32 0.0, %v991
      %993 = vdwg.mxu0
      %994 = vmatpush.msra.mxu0 0.0
      %995 = vmatpush.msra.mxu0 0.0
      %996 = vmatpush.msra.mxu0 0.0
      %997 = vmatpush.msra.mxu0 0.0
      %998 = vmatpush.msra.mxu0 0.0
      %999 = vmatpush.msra.mxu0 0.0
      %1000 = vmatpush.msra.mxu0 0.0
      %1001 = vmatpush.msra.mxu0 0.0
      %1002 = vmatpush.msra.mxu0 0.0
      %1003 = vmatpush.msra.mxu0 0.0
      %1004 = vmatpush.msra.mxu0 0.0
      %1005 = vmatpush.msra.mxu0 0.0
      %1006 = vmatpush.msra.mxu0 0.0
      %1007 = vmatpush.msra.mxu0 0.0
      %1008 = vmatpush.msra.mxu0 0.0
      %1009 = vmatpush.msra.mxu0 %v952
      %1010 = vmatmul.f32.gmra.mxu0 %v946
      %v1011 = vpop.f32.mrf.mxu0
      %v1012 = vadd.f32 0.0, %v1011
      %1013 = vdwg.mxu0
      %v1014 = vadd.f32 %v921, %v972
      %v1015 = vadd.f32 %v922, %v992
      %v1016 = vadd.f32 %v923, %v1012
      %v1017 = vld [vmem:[%s2] sm:$0xff]
      %1019 = vset.pattern.permute.xlu0 0
      %1020 = vperm.xlu0 %1019, %v1017
      %v1021 = vpop.permute.xlu0 %1020
      %v1023 = vadd.f32 %v1014, %v1021
      %v1024 = vadd.f32 %v1015, %v1021
      %v1025 = vadd.f32 %v1016, %v1021
      %1026 = vst [vmem:[%s192] sm:$0xff] %v1023
      %1027 = vst [vmem:[%s192 + $0x8] sm:$0xff] %v1024
      %1028 = vst [vmem:[%s192 + $0x10] sm:$0xff] %v1025
      %s1029 = smul.u32 3, %s19
      %p1030 = scmp.lt.s32.totalorder %s18, 1
      %s1031 = scalar_select %p1030, %s18, 1
      %p1032 = scmp.lt.s32.totalorder %s1029, 2
      %s1033 = scalar_select %p1032, %s1029, 2
      %s1034 = smul.addr %s1031, 3
      %s1035 = sadd.s32 %s1033, %s1034
      %s1036 = smul.addr %s1035, 8
      %s1037 = scalar_lea.vmem %s3, %s1036
      // Predicated region
      $region33: #{alter_conv2d.1} parent=31 // pred_check
        %p1038 = pneg %p114
      $region34: #{alter_conv2d.1} parent=31 // pred_check_branch
        %1040 = sbr.rel (%p1038) target = $region36
      $region35: #{alter_conv2d.1} parent=31 // pred_region
        %s1041 = smul.u32 3, %s19
      $region36: #{alter_conv2d.1} parent=31 // pred_fallthru
        _
    $region32: #{alter_conv2d.1} parent=5 // pred_fallthru
      _
    %p1042 = scmp.le.s32.totalorder 2, %s9
    // Predicated region
    $region37: #{alter_conv2d.1} parent=5 // pred_check
      %p1043 = pneg %p1042
    $region38: #{alter_conv2d.1} parent=5 // pred_check_branch
      %1045 = sbr.rel (%p1043) target = $region40
    $region39: #{alter_conv2d.1} parent=5 // pred_region
      %s1046 = ssub.s32 %s9, 2
      // Predicated region
      $region41: #{alter_conv2d.1} parent=39 // pred_check
        %p1047 = pneg %p120
      $region42: #{alter_conv2d.1} parent=39 // pred_check_branch
        %1049 = sbr.rel (%p1047) target = $region44
      $region43: #{alter_conv2d.1} parent=39 // pred_region
        %s1050 = smul.u32 3, %s21
        %p1051 = scmp.lt.s32.totalorder %s20, 1
        %s1052 = scalar_select %p1051, %s20, 1
        %p1053 = scmp.lt.s32.totalorder %s1050, 2
        %s1054 = scalar_select %p1053, %s1050, 2
        %s1055 = smul.addr %s1052, 3
        %s1056 = sadd.s32 %s1054, %s1055
        %s1057 = smul.addr %s1056, 8
        %s1058 = scalar_lea.vmem %s3, %s1057
      $region44: #{alter_conv2d.1} parent=39 // pred_fallthru
        _
    $region40: #{alter_conv2d.1} parent=5 // pred_fallthru
      _
  $region6: #{alter_conv2d.1} parent=0 // loop_footer
    %s13 = sadd.s32 1, %s9
  $region7: #{alter_conv2d.1} parent=0 // loop_footer_branch
    %8 = sbr.rel target = $region3
  $region8: #{alter_conv2d.1} parent=0 // loop_exit
    _

</llo_original>
